<compile_context>
chip_gen: v5e
topology: v5e:2x2
jax: 0.10.0
libtpu: 0.0.40
codegen_flags: <defaults>
</compile_context>

<pallas_src>
import jax
import jax.numpy as jnp
from jax.experimental import pallas as pl
from jax.experimental.pallas import tpu as pltpu


def _outconv_kernel(x_ref, w_ref, b_ref, o_ref):
    # x_ref: (N, C_in, TL)   w_ref: (C_out, C_in)
    # b_ref: (C_out, 1)      o_ref: (N, C_out, TL)
    w = w_ref[...]
    b = b_ref[...]
    n_batch = x_ref.shape[0]
    for n in range(n_batch):  # static unroll; N is small and folded into the block
        acc = jnp.dot(w, x_ref[n], preferred_element_type=jnp.float32)  # (C_out, TL)
        o_ref[n] = (acc + b).astype(o_ref.dtype)


def _pad8(c):
    return max(8, ((c + 7) // 8) * 8)


def _pick_lane_tile(N, C_in, C_out, L, *, vmem_block_budget=24 * 1024 * 1024):
    """Largest 128-multiple lane tile under the VMEM budget, >= 2 grid steps."""
    f32 = 4
    # Per-lane VMEM bytes for one step (sublane dims pad to multiples of 8):
    #   2x double-buffered input block  : 2 * N * pad(C_in)  * 4
    #   2x double-buffered output block : 2 * N * pad(C_out) * 4
    #   ~1x f32 intermediates (dot+bias): N * (pad(C_in) + pad(C_out)) * 4
    per_lane = f32 * N * (3 * _pad8(C_in) + 3 * _pad8(C_out))
    tl_vmem = max(128, (vmem_block_budget // per_lane) // 128 * 128)
    # Keep at least 2 parallel grid steps so both v7x TensorCores are used.
    tl_half = max(128, ((pl.cdiv(L, 2) + 127) // 128) * 128)
    tl = min(tl_vmem, tl_half)
    if tl >= L:
        return L  # single full-extent block (small L); always legal
    return tl


def out_conv(x, weight, bias):
    """x: (N, C_in, L) f32; weight: (C_out, C_in, 1); bias: (C_out,) -> (N, C_out, L)."""
    N, C_in, L = x.shape
    C_out = weight.shape[0]

    w2d = weight[:, :, 0]            # (C_out, C_in)
    b2d = bias.reshape(C_out, 1)     # (C_out, 1); broadcasts over lanes in-kernel

    TL = _pick_lane_tile(N, C_in, C_out, L)
    grid = (pl.cdiv(L, TL),)

    return pl.pallas_call(
        _outconv_kernel,
        out_shape=jax.ShapeDtypeStruct((N, C_out, L), x.dtype),
        grid_spec=pltpu.PrefetchScalarGridSpec(
            num_scalar_prefetch=0,
            grid=grid,
            in_specs=[
                pl.BlockSpec((N, C_in, TL), lambda l: (0, 0, l)),
                pl.BlockSpec((C_out, C_in), lambda l: (0, 0)),
                pl.BlockSpec((C_out, 1), lambda l: (0, 0)),
            ],
            out_specs=pl.BlockSpec((N, C_out, TL), lambda l: (0, 0, l)),
        ),
        compiler_params=pltpu.CompilerParams(
            dimension_semantics=("parallel",),
            vmem_limit_bytes=32 * 1024 * 1024,
        ),
    )(x, w2d, b2d)


if __name__ == "__main__":
    key = jax.random.PRNGKey(0)
    kx, kw, kb = jax.random.split(key, 3)

    # Shapes consistent with OutConv(in_channels=4, out_channels=3); L chosen
    # so the kernel exercises the tiled L grid with N folded into the block.
    N, C_in, C_out, L = 2, 4, 3, 2048

    x = jax.random.normal(kx, (N, C_in, L), dtype=jnp.float32)

    # deterministic "PyTorch-like" init: uniform(-1/sqrt(fan_in), 1/sqrt(fan_in))
    bound = 1.0 / (C_in ** 0.5)
    weight = jax.random.uniform(kw, (C_out, C_in, 1), jnp.float32, -bound, bound)
    bias = jax.random.uniform(kb, (C_out,), jnp.float32, -bound, bound)

    out = out_conv(x, weight, bias)
    out = jax.block_until_ready(out)

    # reference check (pure JAX einsum of the same 1x1 conv)
    ref = jnp.einsum("oc,ncl->nol", weight[:, :, 0], x) + bias[None, :, None]
    assert out.shape == (N, C_out, L)
    assert jnp.allclose(out, ref, atol=1e-5, rtol=1e-5)

    print("KERNEL_OK")
</pallas_src>

<mosaic_0001>
module attributes {stable_mosaic.version = 11 : i64} {
  func.func @_outconv_kernel(%arg0: i32, %arg1: memref<2x4x1024xf32, #tpu.memory_space<vmem>>, %arg2: memref<3x4xf32, #tpu.memory_space<vmem>>, %arg3: memref<3x1xf32, #tpu.memory_space<vmem>>, %arg4: memref<2x3x1024xf32, #tpu.memory_space<vmem>>) attributes {dimension_semantics = [#tpu.dimension_semantics<parallel>], iteration_bounds = array<i64: 2>, scalar_prefetch = 0 : i64, scratch_operands = 0 : i64, tpu.core_type = #tpu.core_type<tc>, window_params = [{transform_indices = @transform_0, window_bounds = array<i64: 2, 4, 1024>}, {pipeline_mode = #tpu.pipeline_mode<synchronous>, transform_indices = @transform_1, window_bounds = array<i64: 3, 4>}, {pipeline_mode = #tpu.pipeline_mode<synchronous>, transform_indices = @transform_2, window_bounds = array<i64: 3, 1>}, {transform_indices = @transform_3, window_bounds = array<i64: 2, 3, 1024>}]} {
    %c0 = arith.constant 0 : index
    %c0_0 = arith.constant 0 : index
    %0 = vector.load %arg2[%c0, %c0_0] : memref<3x4xf32, #tpu.memory_space<vmem>>, vector<3x4xf32>
    %c0_1 = arith.constant 0 : index
    %c0_2 = arith.constant 0 : index
    %1 = vector.load %arg3[%c0_1, %c0_2] : memref<3x1xf32, #tpu.memory_space<vmem>>, vector<3x1xf32>
    %c0_3 = arith.constant 0 : index
    %c0_4 = arith.constant 0 : index
    %c0_5 = arith.constant 0 : index
    %2 = vector.load %arg1[%c0_3, %c0_4, %c0_5] : memref<2x4x1024xf32, #tpu.memory_space<vmem>>, vector<1x4x1024xf32>
    %3 = vector.shape_cast %2 : vector<1x4x1024xf32> to vector<4x1024xf32>
    %cst = arith.constant dense<0.000000e+00> : vector<3x1024xf32>
    %4 = tpu.matmul %0, %3, %cst {dimension_numbers = #tpu.dot_dimension_numbers<[1], [0], [0], [1], [0, 0, 1, 1], [], []>} : vector<3x4xf32>, vector<4x1024xf32>, vector<3x1024xf32> -> vector<3x1024xf32>
    %5 = vector.broadcast %1 : vector<3x1xf32> to vector<3x1024xf32>
    %6 = arith.addf %4, %5 : vector<3x1024xf32>
    %c0_6 = arith.constant 0 : index
    %c0_7 = arith.constant 0 : index
    %c0_8 = arith.constant 0 : index
    %7 = vector.load %arg4[%c0_6, %c0_7, %c0_8] : memref<2x3x1024xf32, #tpu.memory_space<vmem>>, vector<1x3x1024xf32>
    %8 = vector.shape_cast %7 : vector<1x3x1024xf32> to vector<3x1024xf32>
    %9 = vector.shape_cast %6 : vector<3x1024xf32> to vector<1x3x1024xf32>
    tpu.vector_store %arg4[%c0_6, %c0_7, %c0_8], %9 {strides = array<i32>} : memref<2x3x1024xf32, #tpu.memory_space<vmem>>, vector<1x3x1024xf32>,
    %c1 = arith.constant 1 : index
    %c0_9 = arith.constant 0 : index
    %c0_10 = arith.constant 0 : index
    %10 = vector.load %arg1[%c1, %c0_9, %c0_10] : memref<2x4x1024xf32, #tpu.memory_space<vmem>>, vector<1x4x1024xf32>
    %11 = vector.shape_cast %10 : vector<1x4x1024xf32> to vector<4x1024xf32>
    %cst_11 = arith.constant dense<0.000000e+00> : vector<3x1024xf32>
    %12 = tpu.matmul %0, %11, %cst_11 {dimension_numbers = #tpu.dot_dimension_numbers<[1], [0], [0], [1], [0, 0, 1, 1], [], []>} : vector<3x4xf32>, vector<4x1024xf32>, vector<3x1024xf32> -> vector<3x1024xf32>
    %13 = vector.broadcast %1 : vector<3x1xf32> to vector<3x1024xf32>
    %14 = arith.addf %12, %13 : vector<3x1024xf32>
    %c1_12 = arith.constant 1 : index
    %c0_13 = arith.constant 0 : index
    %c0_14 = arith.constant 0 : index
    %15 = vector.load %arg4[%c1_12, %c0_13, %c0_14] : memref<2x3x1024xf32, #tpu.memory_space<vmem>>, vector<1x3x1024xf32>
    %16 = vector.shape_cast %15 : vector<1x3x1024xf32> to vector<3x1024xf32>
    %17 = vector.shape_cast %14 : vector<3x1024xf32> to vector<1x3x1024xf32>
    tpu.vector_store %arg4[%c1_12, %c0_13, %c0_14], %17 {strides = array<i32>} : memref<2x3x1024xf32, #tpu.memory_space<vmem>>, vector<1x3x1024xf32>,
    return
  }
  func.func @transform_0(%arg0: i32) -> (i32, i32, i32) {
    %c0_i32 = arith.constant 0 : i32
    %c0_i32_0 = arith.constant 0 : i32
    %c0_i32_1 = arith.constant 0 : i32
    return %c0_i32, %c0_i32_0, %arg0 : i32, i32, i32
  }
  func.func @transform_1(%arg0: i32) -> (i32, i32) {
    %c0_i32 = arith.constant 0 : i32
    %c0_i32_0 = arith.constant 0 : i32
    %c0_i32_1 = arith.constant 0 : i32
    return %c0_i32, %c0_i32_0 : i32, i32
  }
  func.func @transform_2(%arg0: i32) -> (i32, i32) {
    %c0_i32 = arith.constant 0 : i32
    %c0_i32_0 = arith.constant 0 : i32
    %c0_i32_1 = arith.constant 0 : i32
    return %c0_i32, %c0_i32_0 : i32, i32
  }
  func.func @transform_3(%arg0: i32) -> (i32, i32, i32) {
    %c0_i32 = arith.constant 0 : i32
    %c0_i32_0 = arith.constant 0 : i32
    %c0_i32_1 = arith.constant 0 : i32
    return %c0_i32, %c0_i32_0, %arg0 : i32, i32, i32
  }
}

</mosaic_0001>

<llo_original>
// kernel: tpu_custom_call.1
$region0: #{tpu_custom_call.1}
  #allocation0 [shape = 'u32[]', space=smem, size = 0x4, offset = 0x4, fixed_abs, tag = 'smem constant byte address 0x4 - core index']
  #allocation1 [shape = 'u32[72,128]{1,0:T(1,128)}', space=vmem, size = 0x9000, scoped, tag = 'internal scratch']
  %s0 = inlined_call_operand.hbm [shape: f32[2,4,2048], index: 0, kind: input, shape index: {}]
  %s1 = inlined_call_operand.vmem [shape: f32[3,4], index: 1, kind: input, shape index: {}]
  %s2 = inlined_call_operand.vmem [shape: f32[3,1], index: 2, kind: input, shape index: {}]
  %s3 = inlined_call_operand.vmem [shape: f32[2,3,2048], index: 3, kind: output, shape index: {}]
  %s4 = sld [smem:[#allocation0]]
  $region68: #{tpu_custom_call.1} parent=0
    _
  %s6 = ssub.s32 1, %s4
  %s7 = scalar_select 0, %s6, %s4
  $region1: #{tpu_custom_call.1} parent=0
    #allocation2 [shape = 'u8[65536]{0}', space=vmem, size = 0x10000, scoped, tag = 'input window, operand 0']
    #allocation3 [shape = 's32[2]{0}', space=sflag, size = 0x8, scoped, tag = 'scoped memory for tpu_custom_call.1']
    #allocation4 [shape = 'u8[65536]{0}', space=vmem, size = 0x10000, scoped, tag = 'output window, operand 0']
    %8 = vsyncpa [#allocation3], 0
    %s9 = scalar_lea.sflag [#allocation3], 1
    %10 = vsyncpa %s9, 0
    loop: start=0, step=1, limit=4
    $region2: #{tpu_custom_call.1} parent=1 // loop_pre_header
      _
    $region3: #{tpu_custom_call.1} parent=1 // loop_header
      %s12 = sphi 0, %s16
      %p13 = scmp.ge.s32.totalorder %s12, 4
      %s22 = sphi 0, %s24
      %s25 = sphi 0, %s22
      %s26 = sphi 0, %s25
      %s42 = sphi 0, %s26
      %s46 = sphi 0, %s46
      %s48 = sphi 0, %s46
      %s49 = sphi 0, %s48
      %s63 = sphi 0, %s49
      %s67 = sphi 0, %s67
      %s69 = sphi 0, %s67
      %s70 = sphi 0, %s69
      %s84 = sphi 0, %s70
      %s90 = sphi 0, %s92
      %s93 = sphi 0, %s90
      %s94 = sphi 0, %s93
      %s110 = sphi 0, %s94
    $region4: #{tpu_custom_call.1} parent=1 // loop_header_branch
      %15 = sbr.rel (%p13) target = $region8
    $region5: #{tpu_custom_call.1} parent=1 // loop_body
      %s17 = ssub.s32 %s12, 1
      %s18 = ssub.s32 %s12, 2
      %s19 = sadd.s32 %s12, 1
      %s20 = ssub.s32 %s12, %s19
      %p21 = scmp.eq.s32.totalorder %s20, 0
      %s23 = sadd.s32 %s22, 1
      %s24 = scalar_select %p21, %s22, %s23
      %p27 = pneg %p21
      %p28 = scmp.eq.s32.totalorder %s12, 1
      %p29 = por %p27, %p28
      %p30 = scmp.ne.s32.totalorder %s22, %s25
      %p31 = scmp.eq.s32.totalorder %s12, 0
      %p32 = por %p30, %p31
      %p33 = scmp.ne.s32.totalorder %s22, %s25
      %p34 = scmp.eq.s32.totalorder %s17, 1
      %p35 = por %p33, %p34
      %p36 = scmp.ne.s32.totalorder %s25, %s26
      %p37 = scmp.eq.s32.totalorder %s17, 0
      %p38 = por %p36, %p37
      %p39 = scmp.ne.s32.totalorder %s25, %s26
      %p40 = scmp.eq.s32.totalorder %s18, 1
      %p41 = por %p39, %p40
      %p43 = scmp.ne.s32.totalorder %s26, %s42
      %p44 = scmp.eq.s32.totalorder %s18, 0
      %p45 = por %p43, %p44
      %s47 = sadd.s32 %s46, 1
      %p50 = scmp.eq.s32.totalorder %s12, 1
      %p51 = scmp.ne.s32.totalorder %s46, %s48
      %p52 = scmp.eq.s32.totalorder %s12, 0
      %p53 = por %p51, %p52
      %p54 = scmp.ne.s32.totalorder %s46, %s48
      %p55 = scmp.eq.s32.totalorder %s17, 1
      %p56 = por %p54, %p55
      %p57 = scmp.ne.s32.totalorder %s48, %s49
      %p58 = scmp.eq.s32.totalorder %s17, 0
      %p59 = por %p57, %p58
      %p60 = scmp.ne.s32.totalorder %s48, %s49
      %p61 = scmp.eq.s32.totalorder %s18, 1
      %p62 = por %p60, %p61
      %p64 = scmp.ne.s32.totalorder %s49, %s63
      %p65 = scmp.eq.s32.totalorder %s18, 0
      %p66 = por %p64, %p65
      %s68 = sadd.s32 %s67, 1
      %p71 = scmp.eq.s32.totalorder %s12, 1
      %p72 = scmp.ne.s32.totalorder %s67, %s69
      %p73 = scmp.eq.s32.totalorder %s12, 0
      %p74 = por %p72, %p73
      %p75 = scmp.ne.s32.totalorder %s67, %s69
      %p76 = scmp.eq.s32.totalorder %s17, 1
      %p77 = por %p75, %p76
      %p78 = scmp.ne.s32.totalorder %s69, %s70
      %p79 = scmp.eq.s32.totalorder %s17, 0
      %p80 = por %p78, %p79
      %p81 = scmp.ne.s32.totalorder %s69, %s70
      %p82 = scmp.eq.s32.totalorder %s18, 1
      %p83 = por %p81, %p82
      %p85 = scmp.ne.s32.totalorder %s70, %s84
      %p86 = scmp.eq.s32.totalorder %s18, 0
      %p87 = por %p85, %p86
      %s88 = ssub.s32 %s12, %s19
      %p89 = scmp.eq.s32.totalorder %s88, 0
      %s91 = sadd.s32 %s90, 1
      %s92 = scalar_select %p89, %s90, %s91
      %p95 = pneg %p89
      %p96 = scmp.eq.s32.totalorder %s12, 1
      %p97 = por %p95, %p96
      %p98 = scmp.ne.s32.totalorder %s90, %s93
      %p99 = scmp.eq.s32.totalorder %s12, 0
      %p100 = por %p98, %p99
      %p101 = scmp.ne.s32.totalorder %s90, %s93
      %p102 = scmp.eq.s32.totalorder %s17, 1
      %p103 = por %p101, %p102
      %p104 = scmp.ne.s32.totalorder %s93, %s94
      %p105 = scmp.eq.s32.totalorder %s17, 0
      %p106 = por %p104, %p105
      %p107 = scmp.ne.s32.totalorder %s93, %s94
      %p108 = scmp.eq.s32.totalorder %s18, 1
      %p109 = por %p107, %p108
      %p111 = scmp.ne.s32.totalorder %s94, %s110
      %p112 = scmp.eq.s32.totalorder %s18, 0
      %p113 = por %p111, %p112
      %p114 = scmp.le.s32.totalorder 1, %s12
      %p115 = scmp.lt.s32.totalorder %s12, 3
      %p116 = pnand %p114, %p115
      %p117 = pneg %p116
      // Predicated region
      $region9: #{tpu_custom_call.1} parent=5 // pred_check
        _
      $region10: #{tpu_custom_call.1} parent=5 // pred_check_branch
        %119 = sbr.rel (%p116) target = $region12
      $region11: #{tpu_custom_call.1} parent=5 // pred_region
        %s120 = ssub.s32 %s12, 1
        // Predicated region
        $region13: #{tpu_custom_call.1} parent=11 // pred_check
          %p121 = pneg %p59
        $region14: #{tpu_custom_call.1} parent=11 // pred_check_branch
          %123 = sbr.rel (%p121) target = $region16
        $region15: #{tpu_custom_call.1} parent=11 // pred_region
          _
        $region16: #{tpu_custom_call.1} parent=11 // pred_fallthru
          _
        // Predicated region
        $region17: #{tpu_custom_call.1} parent=11 // pred_check
          %p124 = pneg %p80
        $region18: #{tpu_custom_call.1} parent=11 // pred_check_branch
          %126 = sbr.rel (%p124) target = $region20
        $region19: #{tpu_custom_call.1} parent=11 // pred_region
          _
        $region20: #{tpu_custom_call.1} parent=11 // pred_fallthru
          _
      $region12: #{tpu_custom_call.1} parent=5 // pred_fallthru
        _
      %p127 = scmp.lt.s32.totalorder %s12, 2
      // Predicated region
      $region21: #{tpu_custom_call.1} parent=5 // pred_check
        %p128 = pneg %p127
      $region22: #{tpu_custom_call.1} parent=5 // pred_check_branch
        %130 = sbr.rel (%p128) target = $region24
      $region23: #{tpu_custom_call.1} parent=5 // pred_region
        // Predicated region
        $region25: #{tpu_custom_call.1} parent=23 // pred_check
          %p131 = pneg %p32
        $region26: #{tpu_custom_call.1} parent=23 // pred_check_branch
          %133 = sbr.rel (%p131) target = $region28
        $region27: #{tpu_custom_call.1} parent=23 // pred_region
          %s134 = sand.u32 %s22, 1
          %s135 = scalar_lea.sflag [#allocation3], %s134
          %s136 = sand.u32 %s22, 1
          %s137 = smul.addr %s136, 64
          %s138 = scalar_lea.vmem [#allocation2], %s137
          %s139 = smul.u32 8, %s12
          %141 = vsyncadd %s135, 0
          %s142 = smul.addr %s139, 4
          %s143 = scalar_lea.hbm %s0, %s142
          %s144 = sshll.u32 %s143, 4
          %s145 = int_to_ptr.hbm [resolvable:$true] %s144
          %s146 = sshll.u32 %s138, 4
          %s147 = int_to_ptr.vmem [resolvable:$true] %s146
          %152 = dma.hbm_to_vmem [thread:$0]  %s145, 1024, %s147, %s135, 1024, 512, 32
        $region28: #{tpu_custom_call.1} parent=23 // pred_fallthru
          _
      $region24: #{tpu_custom_call.1} parent=5 // pred_fallthru
        _
      %p153 = scmp.le.s32.totalorder 1, %s12
      %p154 = scmp.lt.s32.totalorder %s12, 3
      %p155 = pnand %p153, %p154
      %p156 = pneg %p155
      // Predicated region
      $region29: #{tpu_custom_call.1} parent=5 // pred_check
        _
      $region30: #{tpu_custom_call.1} parent=5 // pred_check_branch
        %158 = sbr.rel (%p155) target = $region32
      $region31: #{tpu_custom_call.1} parent=5 // pred_region
        %s159 = ssub.s32 %s12, 1
        %s160 = sand.u32 %s25, 1
        %s161 = scalar_lea.sflag [#allocation3], %s160
        %s162 = sand.u32 %s25, 1
        %s163 = smul.addr %s162, 64
        %s164 = scalar_lea.vmem [#allocation2], %s163
        // Predicated region
        $region33: #{tpu_custom_call.1} parent=31 // pred_check
          %p165 = pneg %p38
        $region34: #{tpu_custom_call.1} parent=31 // pred_check_branch
          %167 = sbr.rel (%p165) target = $region36
        $region35: #{tpu_custom_call.1} parent=31 // pred_region
          %169 = dma.done %s161, 1024
        $region36: #{tpu_custom_call.1} parent=31 // pred_fallthru
          _
        %s170 = sand.u32 %s25, 1
        %s171 = scalar_lea.sflag [#allocation3], %s170
        %s172 = sand.u32 %s25, 1
        %s173 = smul.addr %s172, 64
        %s174 = scalar_lea.vmem [#allocation2], %s173
        %p175 = pneg %p38
        %p176 = pneg %p35
        %p177 = pneg %p59
        %p178 = pneg %p56
        %p179 = pneg %p80
        %p180 = pneg %p77
        %p181 = pneg %p106
        %p182 = pneg %p103
        %s183 = sand.u32 %s93, 1
        %s184 = sand.u32 %s93, 1
        %s185 = smul.addr %s184, 64
        %s186 = scalar_lea.vmem [#allocation4], %s185
        %s187 = smul.u32 8, %s17
        %s188 = smul.u32 8, %s17
        %v189 = vld [vmem:[%s1] sm:$0x7]
        %v190 = vld [vmem:[%s2] sm:$0x7]
        %v191 = vld [vmem:[%s164] sm:$0xff]
        %v192 = vld [vmem:[%s164 + $0x8] sm:$0xff]
        %v193 = vld [vmem:[%s164 + $0x10] sm:$0xff]
        %v194 = vld [vmem:[%s164 + $0x18] sm:$0xff]
        %196 = vset.pattern.permute.xlu0 0
        %197 = vperm.xlu0 %196, %v190
        %v198 = vpop.permute.xlu0 %197
        %204 = vst [vmem:[#allocation1] ss:$2 sm:$0xff] %v191
        %s205 = scalar_lea.vmem [#allocation1], 16
        %206 = vst [vmem:[%s205] ss:$2 sm:$0xff] %v192
        %s207 = scalar_lea.vmem [#allocation1], 32
        %208 = vst [vmem:[%s207] ss:$2 sm:$0xff] %v193
        %s209 = scalar_lea.vmem [#allocation1], 48
        %210 = vst [vmem:[%s209] ss:$2 sm:$0xff] %v194
        %v211 = vld.sshfl [vmem:[#allocation1] sm:$0xff pattern:$0x75316420]
        %v212 = vld.sshfl [vmem:[#allocation1 + $0x8] sm:$0xff pattern:$0x75316420]
        %v213 = vld.sshfl [vmem:[#allocation1 + $0x10] sm:$0xff pattern:$0x75316420]
        %v214 = vld.sshfl [vmem:[#allocation1 + $0x18] sm:$0xff pattern:$0x75316420]
        %v215 = vld.sshfl [vmem:[#allocation1 + $0x20] sm:$0xff pattern:$0x75316420]
        %v216 = vld.sshfl [vmem:[#allocation1 + $0x28] sm:$0xff pattern:$0x75316420]
        %v217 = vld.sshfl [vmem:[#allocation1 + $0x30] sm:$0xff pattern:$0x75316420]
        %v218 = vld.sshfl [vmem:[#allocation1 + $0x38] sm:$0xff pattern:$0x75316420]
        %vm219 = vcmask 31744
        %v221 = vsel %vm219, %v189, 0
        %vm223 = vcmask 1043456
        %v224 = vsel %vm223, %v211, 0
        %v226 = vsel %vm223, %v212, 0
        %v228 = vsel %vm223, %v213, 0
        %v230 = vsel %vm223, %v214, 0
        %v232 = vsel %vm223, %v215, 0
        %v234 = vsel %vm223, %v216, 0
        %v236 = vsel %vm223, %v217, 0
        %v238 = vsel %vm223, %v218, 0
        %240 = vmatpush.msra.mxu0 0.0
        %241 = vmatpush.msra.mxu0 0.0
        %242 = vmatpush.msra.mxu0 0.0
        %243 = vmatpush.msra.mxu0 0.0
        %244 = vmatpush.msra.mxu0 0.0
        %245 = vmatpush.msra.mxu0 0.0
        %246 = vmatpush.msra.mxu0 0.0
        %247 = vmatpush.msra.mxu0 0.0
        %248 = vmatpush.msra.mxu0 0.0
        %249 = vmatpush.msra.mxu0 0.0
        %250 = vmatpush.msra.mxu0 0.0
        %251 = vmatpush.msra.mxu0 0.0
        %252 = vmatpush.msra.mxu0 0.0
        %253 = vmatpush.msra.mxu0 0.0
        %254 = vmatpush.msra.mxu0 0.0
        %255 = vmatpush.msra.mxu0 %v224
        %256 = vmatmul.f32.gmra.mxu0 %v221
        %v257 = vpop.f32.mrf.mxu0
        %v258 = vadd.f32 %v198, %v257
        %259 = vdwg.mxu0
        %260 = vmatpush.msra.mxu0 0.0
        %261 = vmatpush.msra.mxu0 0.0
        %262 = vmatpush.msra.mxu0 0.0
        %263 = vmatpush.msra.mxu0 0.0
        %264 = vmatpush.msra.mxu0 0.0
        %265 = vmatpush.msra.mxu0 0.0
        %266 = vmatpush.msra.mxu0 0.0
        %267 = vmatpush.msra.mxu0 0.0
        %268 = vmatpush.msra.mxu0 0.0
        %269 = vmatpush.msra.mxu0 0.0
        %270 = vmatpush.msra.mxu0 0.0
        %271 = vmatpush.msra.mxu0 0.0
        %272 = vmatpush.msra.mxu0 0.0
        %273 = vmatpush.msra.mxu0 0.0
        %274 = vmatpush.msra.mxu0 0.0
        %275 = vmatpush.msra.mxu0 %v226
        %276 = vmatmul.f32.gmra.mxu0 %v221
        %v277 = vpop.f32.mrf.mxu0
        %v278 = vadd.f32 %v198, %v277
        %279 = vdwg.mxu0
        %280 = vmatpush.msra.mxu0 0.0
        %281 = vmatpush.msra.mxu0 0.0
        %282 = vmatpush.msra.mxu0 0.0
        %283 = vmatpush.msra.mxu0 0.0
        %284 = vmatpush.msra.mxu0 0.0
        %285 = vmatpush.msra.mxu0 0.0
        %286 = vmatpush.msra.mxu0 0.0
        %287 = vmatpush.msra.mxu0 0.0
        %288 = vmatpush.msra.mxu0 0.0
        %289 = vmatpush.msra.mxu0 0.0
        %290 = vmatpush.msra.mxu0 0.0
        %291 = vmatpush.msra.mxu0 0.0
        %292 = vmatpush.msra.mxu0 0.0
        %293 = vmatpush.msra.mxu0 0.0
        %294 = vmatpush.msra.mxu0 0.0
        %295 = vmatpush.msra.mxu0 %v228
        %296 = vmatmul.f32.gmra.mxu0 %v221
        %v297 = vpop.f32.mrf.mxu0
        %v298 = vadd.f32 %v198, %v297
        %299 = vdwg.mxu0
        %300 = vmatpush.msra.mxu0 0.0
        %301 = vmatpush.msra.mxu0 0.0
        %302 = vmatpush.msra.mxu0 0.0
        %303 = vmatpush.msra.mxu0 0.0
        %304 = vmatpush.msra.mxu0 0.0
        %305 = vmatpush.msra.mxu0 0.0
        %306 = vmatpush.msra.mxu0 0.0
        %307 = vmatpush.msra.mxu0 0.0
        %308 = vmatpush.msra.mxu0 0.0
        %309 = vmatpush.msra.mxu0 0.0
        %310 = vmatpush.msra.mxu0 0.0
        %311 = vmatpush.msra.mxu0 0.0
        %312 = vmatpush.msra.mxu0 0.0
        %313 = vmatpush.msra.mxu0 0.0
        %314 = vmatpush.msra.mxu0 0.0
        %315 = vmatpush.msra.mxu0 %v230
        %316 = vmatmul.f32.gmra.mxu0 %v221
        %v317 = vpop.f32.mrf.mxu0
        %v318 = vadd.f32 %v198, %v317
        %319 = vdwg.mxu0
        %320 = vmatpush.msra.mxu0 0.0
        %321 = vmatpush.msra.mxu0 0.0
        %322 = vmatpush.msra.mxu0 0.0
        %323 = vmatpush.msra.mxu0 0.0
        %324 = vmatpush.msra.mxu0 0.0
        %325 = vmatpush.msra.mxu0 0.0
        %326 = vmatpush.msra.mxu0 0.0
        %327 = vmatpush.msra.mxu0 0.0
        %328 = vmatpush.msra.mxu0 0.0
        %329 = vmatpush.msra.mxu0 0.0
        %330 = vmatpush.msra.mxu0 0.0
        %331 = vmatpush.msra.mxu0 0.0
        %332 = vmatpush.msra.mxu0 0.0
        %333 = vmatpush.msra.mxu0 0.0
        %334 = vmatpush.msra.mxu0 0.0
        %335 = vmatpush.msra.mxu0 %v232
        %336 = vmatmul.f32.gmra.mxu0 %v221
        %v337 = vpop.f32.mrf.mxu0
        %v338 = vadd.f32 %v198, %v337
        %339 = vdwg.mxu0
        %340 = vmatpush.msra.mxu0 0.0
        %341 = vmatpush.msra.mxu0 0.0
        %342 = vmatpush.msra.mxu0 0.0
        %343 = vmatpush.msra.mxu0 0.0
        %344 = vmatpush.msra.mxu0 0.0
        %345 = vmatpush.msra.mxu0 0.0
        %346 = vmatpush.msra.mxu0 0.0
        %347 = vmatpush.msra.mxu0 0.0
        %348 = vmatpush.msra.mxu0 0.0
        %349 = vmatpush.msra.mxu0 0.0
        %350 = vmatpush.msra.mxu0 0.0
        %351 = vmatpush.msra.mxu0 0.0
        %352 = vmatpush.msra.mxu0 0.0
        %353 = vmatpush.msra.mxu0 0.0
        %354 = vmatpush.msra.mxu0 0.0
        %355 = vmatpush.msra.mxu0 %v234
        %356 = vmatmul.f32.gmra.mxu0 %v221
        %v357 = vpop.f32.mrf.mxu0
        %v358 = vadd.f32 %v198, %v357
        %359 = vdwg.mxu0
        %360 = vmatpush.msra.mxu0 0.0
        %361 = vmatpush.msra.mxu0 0.0
        %362 = vmatpush.msra.mxu0 0.0
        %363 = vmatpush.msra.mxu0 0.0
        %364 = vmatpush.msra.mxu0 0.0
        %365 = vmatpush.msra.mxu0 0.0
        %366 = vmatpush.msra.mxu0 0.0
        %367 = vmatpush.msra.mxu0 0.0
        %368 = vmatpush.msra.mxu0 0.0
        %369 = vmatpush.msra.mxu0 0.0
        %370 = vmatpush.msra.mxu0 0.0
        %371 = vmatpush.msra.mxu0 0.0
        %372 = vmatpush.msra.mxu0 0.0
        %373 = vmatpush.msra.mxu0 0.0
        %374 = vmatpush.msra.mxu0 0.0
        %375 = vmatpush.msra.mxu0 %v236
        %376 = vmatmul.f32.gmra.mxu0 %v221
        %v377 = vpop.f32.mrf.mxu0
        %v378 = vadd.f32 %v198, %v377
        %379 = vdwg.mxu0
        %380 = vmatpush.msra.mxu0 0.0
        %381 = vmatpush.msra.mxu0 0.0
        %382 = vmatpush.msra.mxu0 0.0
        %383 = vmatpush.msra.mxu0 0.0
        %384 = vmatpush.msra.mxu0 0.0
        %385 = vmatpush.msra.mxu0 0.0
        %386 = vmatpush.msra.mxu0 0.0
        %387 = vmatpush.msra.mxu0 0.0
        %388 = vmatpush.msra.mxu0 0.0
        %389 = vmatpush.msra.mxu0 0.0
        %390 = vmatpush.msra.mxu0 0.0
        %391 = vmatpush.msra.mxu0 0.0
        %392 = vmatpush.msra.mxu0 0.0
        %393 = vmatpush.msra.mxu0 0.0
        %394 = vmatpush.msra.mxu0 0.0
        %395 = vmatpush.msra.mxu0 %v238
        %396 = vmatmul.f32.gmra.mxu0 %v221
        %v397 = vpop.f32.mrf.mxu0
        %v398 = vadd.f32 %v198, %v397
        %399 = vdwg.mxu0
        %v408 = vrot.slane %v278, 4
        %v409 = vrot.slane %v318, 4
        %v410 = vrot.slane %v358, 4
        %v411 = vrot.slane %v398, 4
        %v412 = vsel %vm223, %v258, %v408
        %v413 = vsel %vm223, %v298, %v409
        %v414 = vsel %vm223, %v338, %v410
        %v415 = vsel %vm223, %v378, %v411
        %420 = vst [vmem:[%s186] sm:$0x77] %v412
        %421 = vst [vmem:[%s186 + $0x8] sm:$0x77] %v413
        %422 = vst [vmem:[%s186 + $0x10] sm:$0x77] %v414
        %423 = vst [vmem:[%s186 + $0x18] sm:$0x77] %v415
        %s424 = scalar_lea.vmem %s164, 32 [#allocation2]
        %v425 = vld [vmem:[%s424] sm:$0xff]
        %v426 = vld [vmem:[%s424 + $0x8] sm:$0xff]
        %v427 = vld [vmem:[%s424 + $0x10] sm:$0xff]
        %v428 = vld [vmem:[%s424 + $0x18] sm:$0xff]
        %433 = vst [vmem:[#allocation1] ss:$2 sm:$0xff] %v425
        %s434 = scalar_lea.vmem [#allocation1], 16
        %435 = vst [vmem:[%s434] ss:$2 sm:$0xff] %v426
        %s436 = scalar_lea.vmem [#allocation1], 32
        %437 = vst [vmem:[%s436] ss:$2 sm:$0xff] %v427
        %s438 = scalar_lea.vmem [#allocation1], 48
        %439 = vst [vmem:[%s438] ss:$2 sm:$0xff] %v428
        %v440 = vld.sshfl [vmem:[#allocation1] sm:$0xff pattern:$0x75316420]
        %v441 = vld.sshfl [vmem:[#allocation1 + $0x8] sm:$0xff pattern:$0x75316420]
        %v442 = vld.sshfl [vmem:[#allocation1 + $0x10] sm:$0xff pattern:$0x75316420]
        %v443 = vld.sshfl [vmem:[#allocation1 + $0x18] sm:$0xff pattern:$0x75316420]
        %v444 = vld.sshfl [vmem:[#allocation1 + $0x20] sm:$0xff pattern:$0x75316420]
        %v445 = vld.sshfl [vmem:[#allocation1 + $0x28] sm:$0xff pattern:$0x75316420]
        %v446 = vld.sshfl [vmem:[#allocation1 + $0x30] sm:$0xff pattern:$0x75316420]
        %v447 = vld.sshfl [vmem:[#allocation1 + $0x38] sm:$0xff pattern:$0x75316420]
        %v448 = vsel %vm223, %v440, 0
        %v450 = vsel %vm223, %v441, 0
        %v452 = vsel %vm223, %v442, 0
        %v454 = vsel %vm223, %v443, 0
        %v456 = vsel %vm223, %v444, 0
        %v458 = vsel %vm223, %v445, 0
        %v460 = vsel %vm223, %v446, 0
        %v462 = vsel %vm223, %v447, 0
        %464 = vmatpush.msra.mxu0 0.0
        %465 = vmatpush.msra.mxu0 0.0
        %466 = vmatpush.msra.mxu0 0.0
        %467 = vmatpush.msra.mxu0 0.0
        %468 = vmatpush.msra.mxu0 0.0
        %469 = vmatpush.msra.mxu0 0.0
        %470 = vmatpush.msra.mxu0 0.0
        %471 = vmatpush.msra.mxu0 0.0
        %472 = vmatpush.msra.mxu0 0.0
        %473 = vmatpush.msra.mxu0 0.0
        %474 = vmatpush.msra.mxu0 0.0
        %475 = vmatpush.msra.mxu0 0.0
        %476 = vmatpush.msra.mxu0 0.0
        %477 = vmatpush.msra.mxu0 0.0
        %478 = vmatpush.msra.mxu0 0.0
        %479 = vmatpush.msra.mxu0 %v448
        %480 = vmatmul.f32.gmra.mxu0 %v221
        %v481 = vpop.f32.mrf.mxu0
        %v482 = vadd.f32 %v198, %v481
        %483 = vdwg.mxu0
        %484 = vmatpush.msra.mxu0 0.0
        %485 = vmatpush.msra.mxu0 0.0
        %486 = vmatpush.msra.mxu0 0.0
        %487 = vmatpush.msra.mxu0 0.0
        %488 = vmatpush.msra.mxu0 0.0
        %489 = vmatpush.msra.mxu0 0.0
        %490 = vmatpush.msra.mxu0 0.0
        %491 = vmatpush.msra.mxu0 0.0
        %492 = vmatpush.msra.mxu0 0.0
        %493 = vmatpush.msra.mxu0 0.0
        %494 = vmatpush.msra.mxu0 0.0
        %495 = vmatpush.msra.mxu0 0.0
        %496 = vmatpush.msra.mxu0 0.0
        %497 = vmatpush.msra.mxu0 0.0
        %498 = vmatpush.msra.mxu0 0.0
        %499 = vmatpush.msra.mxu0 %v450
        %500 = vmatmul.f32.gmra.mxu0 %v221
        %v501 = vpop.f32.mrf.mxu0
        %v502 = vadd.f32 %v198, %v501
        %503 = vdwg.mxu0
        %504 = vmatpush.msra.mxu0 0.0
        %505 = vmatpush.msra.mxu0 0.0
        %506 = vmatpush.msra.mxu0 0.0
        %507 = vmatpush.msra.mxu0 0.0
        %508 = vmatpush.msra.mxu0 0.0
        %509 = vmatpush.msra.mxu0 0.0
        %510 = vmatpush.msra.mxu0 0.0
        %511 = vmatpush.msra.mxu0 0.0
        %512 = vmatpush.msra.mxu0 0.0
        %513 = vmatpush.msra.mxu0 0.0
        %514 = vmatpush.msra.mxu0 0.0
        %515 = vmatpush.msra.mxu0 0.0
        %516 = vmatpush.msra.mxu0 0.0
        %517 = vmatpush.msra.mxu0 0.0
        %518 = vmatpush.msra.mxu0 0.0
        %519 = vmatpush.msra.mxu0 %v452
        %520 = vmatmul.f32.gmra.mxu0 %v221
        %v521 = vpop.f32.mrf.mxu0
        %v522 = vadd.f32 %v198, %v521
        %523 = vdwg.mxu0
        %524 = vmatpush.msra.mxu0 0.0
        %525 = vmatpush.msra.mxu0 0.0
        %526 = vmatpush.msra.mxu0 0.0
        %527 = vmatpush.msra.mxu0 0.0
        %528 = vmatpush.msra.mxu0 0.0
        %529 = vmatpush.msra.mxu0 0.0
        %530 = vmatpush.msra.mxu0 0.0
        %531 = vmatpush.msra.mxu0 0.0
        %532 = vmatpush.msra.mxu0 0.0
        %533 = vmatpush.msra.mxu0 0.0
        %534 = vmatpush.msra.mxu0 0.0
        %535 = vmatpush.msra.mxu0 0.0
        %536 = vmatpush.msra.mxu0 0.0
        %537 = vmatpush.msra.mxu0 0.0
        %538 = vmatpush.msra.mxu0 0.0
        %539 = vmatpush.msra.mxu0 %v454
        %540 = vmatmul.f32.gmra.mxu0 %v221
        %v541 = vpop.f32.mrf.mxu0
        %v542 = vadd.f32 %v198, %v541
        %543 = vdwg.mxu0
        %544 = vmatpush.msra.mxu0 0.0
        %545 = vmatpush.msra.mxu0 0.0
        %546 = vmatpush.msra.mxu0 0.0
        %547 = vmatpush.msra.mxu0 0.0
        %548 = vmatpush.msra.mxu0 0.0
        %549 = vmatpush.msra.mxu0 0.0
        %550 = vmatpush.msra.mxu0 0.0
        %551 = vmatpush.msra.mxu0 0.0
        %552 = vmatpush.msra.mxu0 0.0
        %553 = vmatpush.msra.mxu0 0.0
        %554 = vmatpush.msra.mxu0 0.0
        %555 = vmatpush.msra.mxu0 0.0
        %556 = vmatpush.msra.mxu0 0.0
        %557 = vmatpush.msra.mxu0 0.0
        %558 = vmatpush.msra.mxu0 0.0
        %559 = vmatpush.msra.mxu0 %v456
        %560 = vmatmul.f32.gmra.mxu0 %v221
        %v561 = vpop.f32.mrf.mxu0
        %v562 = vadd.f32 %v198, %v561
        %563 = vdwg.mxu0
        %564 = vmatpush.msra.mxu0 0.0
        %565 = vmatpush.msra.mxu0 0.0
        %566 = vmatpush.msra.mxu0 0.0
        %567 = vmatpush.msra.mxu0 0.0
        %568 = vmatpush.msra.mxu0 0.0
        %569 = vmatpush.msra.mxu0 0.0
        %570 = vmatpush.msra.mxu0 0.0
        %571 = vmatpush.msra.mxu0 0.0
        %572 = vmatpush.msra.mxu0 0.0
        %573 = vmatpush.msra.mxu0 0.0
        %574 = vmatpush.msra.mxu0 0.0
        %575 = vmatpush.msra.mxu0 0.0
        %576 = vmatpush.msra.mxu0 0.0
        %577 = vmatpush.msra.mxu0 0.0
        %578 = vmatpush.msra.mxu0 0.0
        %579 = vmatpush.msra.mxu0 %v458
        %580 = vmatmul.f32.gmra.mxu0 %v221
        %v581 = vpop.f32.mrf.mxu0
        %v582 = vadd.f32 %v198, %v581
        %583 = vdwg.mxu0
        %584 = vmatpush.msra.mxu0 0.0
        %585 = vmatpush.msra.mxu0 0.0
        %586 = vmatpush.msra.mxu0 0.0
        %587 = vmatpush.msra.mxu0 0.0
        %588 = vmatpush.msra.mxu0 0.0
        %589 = vmatpush.msra.mxu0 0.0
        %590 = vmatpush.msra.mxu0 0.0
        %591 = vmatpush.msra.mxu0 0.0
        %592 = vmatpush.msra.mxu0 0.0
        %593 = vmatpush.msra.mxu0 0.0
        %594 = vmatpush.msra.mxu0 0.0
        %595 = vmatpush.msra.mxu0 0.0
        %596 = vmatpush.msra.mxu0 0.0
        %597 = vmatpush.msra.mxu0 0.0
        %598 = vmatpush.msra.mxu0 0.0
        %599 = vmatpush.msra.mxu0 %v460
        %600 = vmatmul.f32.gmra.mxu0 %v221
        %v601 = vpop.f32.mrf.mxu0
        %v602 = vadd.f32 %v198, %v601
        %603 = vdwg.mxu0
        %604 = vmatpush.msra.mxu0 0.0
        %605 = vmatpush.msra.mxu0 0.0
        %606 = vmatpush.msra.mxu0 0.0
        %607 = vmatpush.msra.mxu0 0.0
        %608 = vmatpush.msra.mxu0 0.0
        %609 = vmatpush.msra.mxu0 0.0
        %610 = vmatpush.msra.mxu0 0.0
        %611 = vmatpush.msra.mxu0 0.0
        %612 = vmatpush.msra.mxu0 0.0
        %613 = vmatpush.msra.mxu0 0.0
        %614 = vmatpush.msra.mxu0 0.0
        %615 = vmatpush.msra.mxu0 0.0
        %616 = vmatpush.msra.mxu0 0.0
        %617 = vmatpush.msra.mxu0 0.0
        %618 = vmatpush.msra.mxu0 0.0
        %619 = vmatpush.msra.mxu0 %v462
        %620 = vmatmul.f32.gmra.mxu0 %v221
        %v621 = vpop.f32.mrf.mxu0
        %v622 = vadd.f32 %v198, %v621
        %623 = vdwg.mxu0
        %v632 = vrot.slane %v502, 4
        %v633 = vrot.slane %v542, 4
        %v634 = vrot.slane %v582, 4
        %v635 = vrot.slane %v622, 4
        %v636 = vsel %vm223, %v482, %v632
        %v637 = vsel %vm223, %v522, %v633
        %v638 = vsel %vm223, %v562, %v634
        %v639 = vsel %vm223, %v602, %v635
        %s644 = scalar_lea.vmem %s186, 32 [#allocation4]
        %645 = vst [vmem:[%s644] sm:$0x77] %v636
        %646 = vst [vmem:[%s644 + $0x8] sm:$0x77] %v637
        %647 = vst [vmem:[%s644 + $0x10] sm:$0x77] %v638
        %648 = vst [vmem:[%s644 + $0x18] sm:$0x77] %v639
        %s649 = sand.u32 %s93, 1
        %s650 = sand.u32 %s93, 1
        %s651 = smul.addr %s650, 64
        %s652 = scalar_lea.vmem [#allocation4], %s651
        // Predicated region
        $region37: #{tpu_custom_call.1} parent=31 // pred_check
          %p653 = pneg %p103
        $region38: #{tpu_custom_call.1} parent=31 // pred_check_branch
          %655 = sbr.rel (%p653) target = $region40
        $region39: #{tpu_custom_call.1} parent=31 // pred_region
          %s656 = smul.u32 8, %s17
          %s657 = smul.addr %s656, 4
          %s658 = scalar_lea.vmem %s3, %s657
          // Predicated region
          $region41: #{tpu_custom_call.1} parent=39 // pred_check
            _
          $region42: #{tpu_custom_call.1} parent=39 // pred_check_branch
            %660 = sbr.rel (0) target = $region44
          $region43: #{tpu_custom_call.1} parent=39 // pred_region
            // Predicated region
            $region45: #{tpu_custom_call.1} parent=43 // pred_check
              _
            $region46: #{tpu_custom_call.1} parent=43 // pred_check_branch
              %662 = sbr.rel (0) target = $region48
            $region47: #{tpu_custom_call.1} parent=43 // pred_region
              loop: start=0, step=1, limit=1
              $region49: #{tpu_custom_call.1} parent=47 // loop_pre_header
                _
              $region50: #{tpu_custom_call.1} parent=47 // loop_header
                %s664 = sphi 0, %s668
                %p665 = scmp.ge.s32.totalorder %s664, 1
                %s669 = sphi %s652, %s652
                %s670 = sphi %s658, %s658
              $region51: #{tpu_custom_call.1} parent=47 // loop_header_branch
                %667 = sbr.rel (%p665) target = $region55
              $region52: #{tpu_custom_call.1} parent=47 // loop_body
                %v671 = vld [vmem:[%s669] sm:$0xff]
                %672 = vst [vmem:[%s670] sm:$0xff] %v671
                %v673 = vld [vmem:[%s669 + $0x8] sm:$0xff]
                %674 = vst [vmem:[%s670 + $0x8] sm:$0xff] %v673
                %v675 = vld [vmem:[%s669 + $0x10] sm:$0xff]
                %676 = vst [vmem:[%s670 + $0x10] sm:$0xff] %v675
                %v677 = vld [vmem:[%s669 + $0x18] sm:$0xff]
                %678 = vst [vmem:[%s670 + $0x18] sm:$0xff] %v677
                %v679 = vld [vmem:[%s669 + $0x20] sm:$0xff]
                %680 = vst [vmem:[%s670 + $0x40] sm:$0xff] %v679
                %v681 = vld [vmem:[%s669 + $0x28] sm:$0xff]
                %682 = vst [vmem:[%s670 + $0x48] sm:$0xff] %v681
                %v683 = vld [vmem:[%s669 + $0x30] sm:$0xff]
                %684 = vst [vmem:[%s670 + $0x50] sm:$0xff] %v683
                %v685 = vld [vmem:[%s669 + $0x38] sm:$0xff]
                %686 = vst [vmem:[%s670 + $0x58] sm:$0xff] %v685
              $region53: #{tpu_custom_call.1} parent=47 // loop_footer
                %s668 = sadd.s32 1, %s664
              $region54: #{tpu_custom_call.1} parent=47 // loop_footer_branch
                %663 = sbr.rel target = $region50
              $region55: #{tpu_custom_call.1} parent=47 // loop_exit
                _
            $region48: #{tpu_custom_call.1} parent=43 // pred_fallthru
              _
            // Predicated region
            $region56: #{tpu_custom_call.1} parent=43 // pred_check
              _
            $region57: #{tpu_custom_call.1} parent=43 // pred_check_branch
              %688 = sbr.rel target = $region59
            $region58: #{tpu_custom_call.1} parent=43 // pred_region
              _
            $region59: #{tpu_custom_call.1} parent=43 // pred_fallthru
              _
          $region44: #{tpu_custom_call.1} parent=39 // pred_fallthru
            _
          %689 = vnop
        $region40: #{tpu_custom_call.1} parent=31 // pred_fallthru
          _
      $region32: #{tpu_custom_call.1} parent=5 // pred_fallthru
        _
      %p690 = scmp.le.s32.totalorder 2, %s12
      // Predicated region
      $region60: #{tpu_custom_call.1} parent=5 // pred_check
        %p691 = pneg %p690
      $region61: #{tpu_custom_call.1} parent=5 // pred_check_branch
        %693 = sbr.rel (%p691) target = $region63
      $region62: #{tpu_custom_call.1} parent=5 // pred_region
        %s694 = ssub.s32 %s12, 2
        // Predicated region
        $region64: #{tpu_custom_call.1} parent=62 // pred_check
          %p695 = pneg %p109
        $region65: #{tpu_custom_call.1} parent=62 // pred_check_branch
          %697 = sbr.rel (%p695) target = $region67
        $region66: #{tpu_custom_call.1} parent=62 // pred_region
          %s698 = sand.u32 %s94, 1
          %s699 = sand.u32 %s94, 1
          %s700 = smul.addr %s699, 64
          %s701 = scalar_lea.vmem [#allocation4], %s700
        $region67: #{tpu_custom_call.1} parent=62 // pred_fallthru
          _
      $region63: #{tpu_custom_call.1} parent=5 // pred_fallthru
        _
    $region6: #{tpu_custom_call.1} parent=1 // loop_footer
      %s16 = sadd.s32 1, %s12
    $region7: #{tpu_custom_call.1} parent=1 // loop_footer_branch
      %11 = sbr.rel target = $region3
    $region8: #{tpu_custom_call.1} parent=1 // loop_exit
      _
    %702 = vsyncpa [#allocation3], 1
    %s703 = scalar_lea.sflag [#allocation3], 1
    %704 = vsyncpa %s703, 1

</llo_original>
